<compile_context>
chip_gen: v6e
topology: v6e:2x2x1
jax: 0.10.0
libtpu: 0.0.40
codegen_flags: <defaults>
</compile_context>

<pallas_src>
import functools

import jax
import jax.numpy as jnp
from jax.experimental import pallas as pl
from jax.experimental.pallas import tpu as pltpu


def _round_up(x, m):
    return ((x + m - 1) // m) * m


# -----------------------------------------------------------------------------
# Fused kernel: phase 0 = conv (+ projection) + BN stats, phase 1 = BN epilogue
# -----------------------------------------------------------------------------
def _fused_conv_block_kernel(x_ref, w_ref, gb_ref, out_ref,
                             conv_sc, sum_sc, sq_sc, aff_sc, *,
                             k_taps, stride, l_tile, span_w,
                             c_out, c_out_p, n_batch, n_tiles,
                             l_out, pad, count, eps, has_proj, add_identity,
                             mm_dtype):
    """
    x_ref   : (N, C_in_p, L_src)   zero-padded input, VMEM-resident across the whole grid
    w_ref   : (C_rows, K*C_in_p)   packed weights (main conv rows [+ shortcut 1x1 rows]), mm_dtype
    gb_ref  : (C_rows, 2)          per-channel [gamma, beta]
    out_ref : (N, C_out, TL)       final output tile (written in phase 1 only)
    conv_sc : (N, C_rows, L_out_p) persistent pre-BN conv / projection values (VMEM scratch)
    sum_sc, sq_sc : (C_rows, 1)    running per-channel sum / sum-of-squares
    aff_sc  : (C_rows, 2)          folded [scale, shift] (written once at end of phase 0)
    """
    phase = pl.program_id(0)
    j = pl.program_id(1)

    # ---------------------------- phase 0: conv + stats ----------------------------
    @pl.when(phase == 0)
    def _conv_and_stats():
        base_in = pl.multiple_of(j * (l_tile * stride), 128)
        base_out = pl.multiple_of(j * l_tile, 128)
        w = w_ref[...]                                        # (C_rows, K*C_in_p)

        # im2col RHS for the whole batch: (K*C_in_p, N*TL) -> ONE wide MXU matmul per tile.
        per_sample = []
        for n in range(n_batch):                              # static, small batch
            win = x_ref[n, :, pl.ds(base_in, span_w)]         # (C_in_p, span_w)
            if stride == 1:
                taps = [win[:, kk:kk + l_tile] for kk in range(k_taps)]
            else:
                # TODO(synk): for stride > 1, pre-split the resident input into `stride`
                # lane-phase copies in the wrapper to avoid strided lane slices per tap.
                last = (l_tile - 1) * stride + 1
                taps = [win[:, kk:kk + last:stride] for kk in range(k_taps)]
            # C_in_p is a multiple of 8 -> this concat is a free sublane stack.
            per_sample.append(taps[0] if k_taps == 1 else jnp.concatenate(taps, axis=0))
        rhs = per_sample[0] if n_batch == 1 else jnp.concatenate(per_sample, axis=1)
        z = jnp.dot(w, rhs.astype(mm_dtype),
                    preferred_element_type=jnp.float32)       # (C_rows, N*TL), f32 accum

        # Stash pre-BN tiles in the persistent VMEM scratch (no HBM round trip).
        for n in range(n_batch):
            conv_sc[n, :, pl.ds(base_out, l_tile)] = z[:, n * l_tile:(n + 1) * l_tile]

        # Single-pass batch statistics; mask columns past the valid L_out tail.
        if l_out % l_tile != 0:
            local = jax.lax.broadcasted_iota(jnp.int32, (1, n_batch * l_tile), 1) % l_tile
            zs = jnp.where(j * l_tile + local < l_out, z, 0.0)
        else:
            zs = z
        s = jnp.sum(zs, axis=1, keepdims=True)                # (C_rows, 1)
        s2 = jnp.sum(zs * zs, axis=1, keepdims=True)

        @pl.when(j == 0)
        def _init():
            sum_sc[...] = jnp.zeros_like(sum_sc)
            sq_sc[...] = jnp.zeros_like(sq_sc)

        sum_sc[...] += s
        sq_sc[...] += s2

        # Fold BN stats with gamma/beta into per-channel scale/shift after the last tile.
        @pl.when(j == n_tiles - 1)
        def _finalize():
            inv_n = 1.0 / count
            mu = sum_sc[...] * inv_n
            var = jnp.maximum(sq_sc[...] * inv_n - mu * mu, 0.0)
            gamma = gb_ref[:, 0:1]
            beta = gb_ref[:, 1:2]
            scale = gamma * jax.lax.rsqrt(var + eps)
            shift = beta - mu * scale
            aff_sc[...] = jnp.concatenate([scale, shift], axis=1)

    # ------------------- phase 1: normalize + residual + ReLU ----------------------
    @pl.when(phase == 1)
    def _epilogue():
        base_out = pl.multiple_of(j * l_tile, 128)
        z = conv_sc[:, :, pl.ds(base_out, l_tile)]            # (N, C_rows, TL)
        scale = aff_sc[:, 0:1][None]                          # (1, C_rows, 1)
        shift = aff_sc[:, 1:2][None]
        zn = z * scale + shift

        y = zn[:, :c_out, :]
        if has_proj:
            y = y + zn[:, c_out_p:c_out_p + c_out, :]         # BN'd 1x1-projection shortcut
        elif add_identity:
            # identity shortcut (C_in == C_out, stride == 1): slice x from the resident input
            y = y + x_ref[:, :c_out, pl.ds(pad + base_out, l_tile)]

        out_ref[...] = jnp.maximum(y, 0.0).astype(out_ref.dtype)
        # TODO(synk): training-mode Dropout(0.2) (use_dropout=True) would need
        # pltpu.prng_seed + pltpu.prng_random_bits here; module default is no dropout.


def _pick_l_tile(l_out_p, *, n, c_in_p, c_rows, c_out, stride, k, l_src, budget_bytes):
    """Largest lane-dense L-tile whose fused VMEM working set fits the budget."""
    fixed = 4 * (2 * n * c_in_p * l_src          # resident padded input (x2 buffering)
                 + c_rows * k * c_in_p           # packed weights
                 + 8 * c_rows                    # gamma/beta + stats/affine scratch
                 + n * c_rows * l_out_p)         # persistent pre-BN VMEM scratch
    for t in (1024, 512, 256, 128):              # all multiples of 128 -> unmasked stores
        if l_out_p % t:
            continue
        span = _round_up((t - 1) * stride + k, 128)
        working = 4 * (2 * n * c_out * t         # double-buffered output block
                       + n * c_in_p * span       # window loads
                       + 2 * n * t * k * c_in_p  # im2col RHS (+ low-precision copy)
                       + 2 * n * t * c_rows)     # matmul result + masked copy
        if fixed + working <= budget_bytes:
            return t
    return None


def conv_block_forward(x, params, *, kernel_size, stride, use_shortcut,
                       eps=1e-5, mm_dtype=jnp.bfloat16):
    """Forward of the PyTorch ConvBlock (train-mode BatchNorm, no dropout)."""
    w, b, gamma, beta, w_sc, gamma_sc, beta_sc = params
    del b  # conv bias is exactly cancelled by train-mode BatchNorm (mean subtraction)

    N, C_in, L = x.shape
    C_out = w.shape[0]
    K = kernel_size
    pad = (K - 1) // 2
    L_out = (L + 2 * pad - K) // stride + 1
    has_proj = use_shortcut and (C_in != C_out or stride != 1)
    add_identity = use_shortcut and not has_proj

    f32 = jnp.float32
    C_in_p = _round_up(C_in, 8)                  # sublane-align the contraction chunks
    C_out_p = _round_up(C_out, 8)
    C_rows = 2 * C_out_p if has_proj else C_out_p
    L_out_p = _round_up(L_out, 128)              # lane-dense output / unmasked stores

    # ---- one-time parameter packing (plain JAX) ----
    w_k = jnp.pad(jnp.transpose(w, (0, 2, 1)).astype(f32),
                  ((0, C_out_p - C_out), (0, 0), (0, C_in_p - C_in)))     # (C_out_p, K, C_in_p)
    w_main = w_k.reshape(C_out_p, K * C_in_p)
    gamma_p = jnp.pad(gamma.astype(f32), (0, C_out_p - C_out))
    beta_p = jnp.pad(beta.astype(f32), (0, C_out_p - C_out))
    if has_proj:
        w_s = jnp.zeros((C_out_p, K, C_in_p), f32)
        w_s = w_s.at[:C_out, pad, :C_in].set(w_sc.astype(f32))            # centre tap only
        w_cat = jnp.concatenate([w_main, w_s.reshape(C_out_p, K * C_in_p)], axis=0)
        gamma_cat = jnp.concatenate([gamma_p, jnp.pad(gamma_sc.astype(f32), (0, C_out_p - C_out))])
        beta_cat = jnp.concatenate([beta_p, jnp.pad(beta_sc.astype(f32), (0, C_out_p - C_out))])
    else:
        w_cat, gamma_cat, beta_cat = w_main, gamma_p, beta_p
    gb = jnp.stack([gamma_cat, beta_cat], axis=1)                         # (C_rows, 2)
    w_cat = w_cat.astype(mm_dtype)

    # Padded input: conv left-pad, channel pad to 8, tail pad so every (padded) output position
    # has an in-bounds window; length rounded to a lane-dense multiple of 128.
    L_src = _round_up((L_out_p - 1) * stride + K, 128)
    x_pad = jnp.pad(x.astype(f32), ((0, 0), (0, C_in_p - C_in), (pad, L_src - pad - L)))

    # VMEM budget: stay under the 32 MiB scoped default (safe on v5e/v6e 128 MiB and v7x 64 MiB).
    budget = 24 * 1024 * 1024
    TL = _pick_l_tile(L_out_p, n=N, c_in_p=C_in_p, c_rows=C_rows, c_out=C_out,
                      stride=stride, k=K, l_src=L_src, budget_bytes=budget)
    if TL is None:
        # TODO(synk): for problems whose pre-BN intermediate does not fit VMEM, fall back to a
        # two-pass variant with per-tile partial stats (which also unlocks v7x 2-TC megacore).
        raise ValueError("ConvBlock too large for the fused VMEM-resident kernel")
    n_tiles = L_out_p // TL
    span_w = (TL - 1) * stride + K

    kernel = functools.partial(
        _fused_conv_block_kernel,
        k_taps=K, stride=stride, l_tile=TL, span_w=span_w,
        c_out=C_out, c_out_p=C_out_p, n_batch=N, n_tiles=n_tiles,
        l_out=L_out, pad=pad, count=float(N * L_out), eps=eps,
        has_proj=has_proj, add_identity=add_identity, mm_dtype=mm_dtype)

    flops = 2 * N * L_out_p * C_rows * (K * C_in_p)
    bytes_accessed = 4 * (N * C_in_p * L_src + C_rows * K * C_in_p + N * C_out * L_out_p)

    out_p = pl.pallas_call(
        kernel,
        out_shape=jax.ShapeDtypeStruct((N, C_out, L_out_p), x.dtype),
        grid_spec=pltpu.PrefetchScalarGridSpec(
            num_scalar_prefetch=0,
            grid=(2, n_tiles),                     # phase (conv+stats / epilogue), L-tiles
            in_specs=[
                pl.BlockSpec((N, C_in_p, L_src), lambda p, j: (0, 0, 0)),   # resident input
                pl.BlockSpec((C_rows, K * C_in_p), lambda p, j: (0, 0)),    # packed weights
                pl.BlockSpec((C_rows, 2), lambda p, j: (0, 0)),             # gamma/beta
            ],
            # p*j: block 0 for all of phase 0 (never written there), tile j in phase 1 ->
            # every writeback carries final data and revisits stay consecutive.
            out_specs=pl.BlockSpec((N, C_out, TL), lambda p, j: (0, 0, p * j)),
            scratch_shapes=[
                pltpu.VMEM((N, C_rows, L_out_p), jnp.float32),   # pre-BN conv(+proj), persistent
                pltpu.VMEM((C_rows, 1), jnp.float32),            # channel sum
                pltpu.VMEM((C_rows, 1), jnp.float32),            # channel sum of squares
                pltpu.VMEM((C_rows, 2), jnp.float32),            # folded [scale, shift]
            ],
        ),
        compiler_params=pltpu.CompilerParams(
            # Both axes carry state through VMEM scratch, hence sequential. A two-pass
            # per-tile-partial-stats variant would unlock v7x megacore parallelism.
            dimension_semantics=("arbitrary", "arbitrary"),
            vmem_limit_bytes=32 * 1024 * 1024),
        cost_estimate=pl.CostEstimate(flops=flops, transcendentals=0,
                                      bytes_accessed=bytes_accessed),
    )(x_pad, w_cat, gb)

    return out_p[:, :, :L_out] if L_out_p != L_out else out_p


# -----------------------------------------------------------------------------
# Pure-JAX reference (lax conv + batch-stat BN) for validation
# -----------------------------------------------------------------------------
def ref_forward(x, params, *, kernel_size, stride, use_shortcut, eps=1e-5):
    w, b, gamma, beta, w_sc, gamma_sc, beta_sc = params
    C_in, C_out = x.shape[1], w.shape[0]
    pad = (kernel_size - 1) // 2
    has_proj = use_shortcut and (C_in != C_out or stride != 1)
    dn = jax.lax.conv_dimension_numbers(x.shape, w.shape, ('NCH', 'OIH', 'NCH'))
    conv = jax.lax.conv_general_dilated(x, w, (stride,), [(pad, pad)], dimension_numbers=dn)
    conv = conv + b[None, :, None]

    def bn(y, g, bt):
        mu = y.mean(axis=(0, 2), keepdims=True)
        var = ((y - mu) ** 2).mean(axis=(0, 2), keepdims=True)
        return g[None, :, None] * (y - mu) / jnp.sqrt(var + eps) + bt[None, :, None]

    out = bn(conv, gamma, beta)
    if use_shortcut:
        if has_proj:
            sc = jax.lax.conv_general_dilated(x, w_sc[:, :, None], (stride,), [(0, 0)],
                                              dimension_numbers=dn)
            sc = bn(sc, gamma_sc, beta_sc)
        else:
            sc = x
        out = out + sc
    return jnp.maximum(out, 0.0)


def _make_params(key, C_in, C_out, K):
    k = jax.random.split(key, 7)
    return (
        0.2 * jax.random.normal(k[0], (C_out, C_in, K), jnp.float32),   # conv weight
        0.1 * jax.random.normal(k[1], (C_out,), jnp.float32),           # conv bias
        1.0 + 0.1 * jax.random.normal(k[2], (C_out,), jnp.float32),     # bn gamma
        0.1 * jax.random.normal(k[3], (C_out,), jnp.float32),           # bn beta
        0.2 * jax.random.normal(k[4], (C_out, C_in), jnp.float32),      # shortcut 1x1 weight
        1.0 + 0.1 * jax.random.normal(k[5], (C_out,), jnp.float32),     # shortcut bn gamma
        0.1 * jax.random.normal(k[6], (C_out,), jnp.float32),           # shortcut bn beta
    )


if __name__ == "__main__":
    key = jax.random.PRNGKey(0)
    configs = [
        # (N, C_in, C_out, L, K, stride, use_shortcut)
        (2, 4, 8, 384, 3, 1, True),    # projection shortcut, 3 L-tiles (multi-tile BN stats)
        (2, 8, 8, 256, 3, 1, True),    # identity shortcut
        (2, 4, 8, 200, 5, 1, False),   # no shortcut, L_out not a multiple of 128 (tail masking)
    ]
    for idx, (N, C_in, C_out, L, K, stride, use_shortcut) in enumerate(configs):
        kp, kx, key = jax.random.split(key, 3)
        params = _make_params(kp, C_in, C_out, K)
        x = jax.random.normal(kx, (N, C_in, L), jnp.float32)

        ref = ref_forward(x, params, kernel_size=K, stride=stride, use_shortcut=use_shortcut)

        # production path: bf16 MXU operands, f32 accumulation / epilogue
        out = conv_block_forward(x, params, kernel_size=K, stride=stride,
                                 use_shortcut=use_shortcut, mm_dtype=jnp.bfloat16)
        out = jax.block_until_ready(out)
        assert out.shape == ref.shape == (N, C_out, L)
        assert jnp.allclose(out, ref, atol=2e-2, rtol=2e-2), f"bf16 mismatch (config {idx})"

        if idx == 0:
            # strict f32 numerics check on one config
            out32 = conv_block_forward(x, params, kernel_size=K, stride=stride,
                                       use_shortcut=use_shortcut, mm_dtype=jnp.float32)
            out32 = jax.block_until_ready(out32)
            assert jnp.allclose(out32, ref, atol=5e-3, rtol=5e-3), "f32 mismatch (config 0)"

    print("KERNEL_OK")
</pallas_src>

<mosaic_0001>
module attributes {stable_mosaic.version = 11 : i64} {
  func.func @_fused_conv_block_kernel(%arg0: i32, %arg1: i32, %arg2: memref<2x8x512xf32, #tpu.memory_space<vmem>>, %arg3: memref<16x24xbf16, #tpu.memory_space<vmem>>, %arg4: memref<16x2xf32, #tpu.memory_space<vmem>>, %arg5: memref<2x8x128xf32, #tpu.memory_space<vmem>>, %arg6: memref<2x16x384xf32, #tpu.memory_space<vmem>>, %arg7: memref<16x1xf32, #tpu.memory_space<vmem>>, %arg8: memref<16x1xf32, #tpu.memory_space<vmem>>, %arg9: memref<16x2xf32, #tpu.memory_space<vmem>>) attributes {dimension_semantics = [#tpu.dimension_semantics<arbitrary>, #tpu.dimension_semantics<arbitrary>], iteration_bounds = array<i64: 2, 3>, scalar_prefetch = 0 : i64, scratch_operands = 4 : i64, tpu.core_type = #tpu.core_type<tc>, window_params = [{pipeline_mode = #tpu.pipeline_mode<synchronous>, transform_indices = @transform_0, window_bounds = array<i64: 2, 8, 512>}, {pipeline_mode = #tpu.pipeline_mode<synchronous>, transform_indices = @transform_1, window_bounds = array<i64: 16, 24>}, {pipeline_mode = #tpu.pipeline_mode<synchronous>, transform_indices = @transform_2, window_bounds = array<i64: 16, 2>}, {transform_indices = @transform_3, window_bounds = array<i64: 2, 8, 128>}]} {
    %c0_i32 = arith.constant 0 : i32
    %0 = arith.cmpi eq, %arg0, %c0_i32 : i32
    %1 = arith.extui %0 : i1 to i32
    %c0_i32_0 = arith.constant 0 : i32
    %2 = arith.cmpi ne, %1, %c0_i32_0 : i32
    scf.if %2 {
      %c128_i32 = arith.constant 128 : i32
      %6 = arith.muli %arg1, %c128_i32 : i32
      %7 = tpu.assume_multiple %6, 128 : i32
      %c128_i32_2 = arith.constant 128 : i32
      %8 = arith.muli %arg1, %c128_i32_2 : i32
      %9 = tpu.assume_multiple %8, 128 : i32
      %c0 = arith.constant 0 : index
      %c0_3 = arith.constant 0 : index
      %10 = vector.load %arg3[%c0, %c0_3] : memref<16x24xbf16, #tpu.memory_space<vmem>>, vector<16x24xbf16>
      %c0_4 = arith.constant 0 : index
      %c0_5 = arith.constant 0 : index
      %11 = arith.index_cast %7 : i32 to index
      %12 = vector.load %arg2[%c0_4, %c0_5, %11] : memref<2x8x512xf32, #tpu.memory_space<vmem>>, vector<1x8x130xf32>
      %13 = vector.shape_cast %12 : vector<1x8x130xf32> to vector<8x130xf32>
      %14 = vector.extract_strided_slice %13 {offsets = [0, 0], sizes = [8, 128], strides = [1, 1]} : vector<8x130xf32> to vector<8x128xf32>
      %15 = vector.extract_strided_slice %13 {offsets = [0, 1], sizes = [8, 128], strides = [1, 1]} : vector<8x130xf32> to vector<8x128xf32>
      %16 = vector.extract_strided_slice %13 {offsets = [0, 2], sizes = [8, 128], strides = [1, 1]} : vector<8x130xf32> to vector<8x128xf32>
      %17 = tpu.concatenate %14, %15, %16 in 0 : vector<8x128xf32>, vector<8x128xf32>, vector<8x128xf32> -> vector<24x128xf32>
      %c1 = arith.constant 1 : index
      %c0_6 = arith.constant 0 : index
      %18 = arith.index_cast %7 : i32 to index
      %19 = vector.load %arg2[%c1, %c0_6, %18] : memref<2x8x512xf32, #tpu.memory_space<vmem>>, vector<1x8x130xf32>
      %20 = vector.shape_cast %19 : vector<1x8x130xf32> to vector<8x130xf32>
      %21 = vector.extract_strided_slice %20 {offsets = [0, 0], sizes = [8, 128], strides = [1, 1]} : vector<8x130xf32> to vector<8x128xf32>
      %22 = vector.extract_strided_slice %20 {offsets = [0, 1], sizes = [8, 128], strides = [1, 1]} : vector<8x130xf32> to vector<8x128xf32>
      %23 = vector.extract_strided_slice %20 {offsets = [0, 2], sizes = [8, 128], strides = [1, 1]} : vector<8x130xf32> to vector<8x128xf32>
      %24 = tpu.concatenate %21, %22, %23 in 0 : vector<8x128xf32>, vector<8x128xf32>, vector<8x128xf32> -> vector<24x128xf32>
      %25 = tpu.concatenate %17, %24 in 1 : vector<24x128xf32>, vector<24x128xf32> -> vector<24x256xf32>
      %26 = arith.truncf %25 : vector<24x256xf32> to vector<24x256xbf16>
      %cst = arith.constant dense<0.000000e+00> : vector<16x256xf32>
      %27 = tpu.matmul %10, %26, %cst {dimension_numbers = #tpu.dot_dimension_numbers<[1], [0], [0], [1], [0, 0, 1, 1], [], []>} : vector<16x24xbf16>, vector<24x256xbf16>, vector<16x256xf32> -> vector<16x256xf32>
      %28 = vector.extract_strided_slice %27 {offsets = [0, 0], sizes = [16, 128], strides = [1, 1]} : vector<16x256xf32> to vector<16x128xf32>
      %c0_7 = arith.constant 0 : index
      %c0_8 = arith.constant 0 : index
      %29 = arith.index_cast %9 : i32 to index
      %30 = vector.load %arg6[%c0_7, %c0_8, %29] : memref<2x16x384xf32, #tpu.memory_space<vmem>>, vector<1x16x128xf32>
      %31 = vector.shape_cast %30 : vector<1x16x128xf32> to vector<16x128xf32>
      %32 = vector.shape_cast %28 : vector<16x128xf32> to vector<1x16x128xf32>
      tpu.vector_store %arg6[%c0_7, %c0_8, %29], %32 {strides = array<i32>} : memref<2x16x384xf32, #tpu.memory_space<vmem>>, vector<1x16x128xf32>,
      %33 = vector.extract_strided_slice %27 {offsets = [0, 128], sizes = [16, 128], strides = [1, 1]} : vector<16x256xf32> to vector<16x128xf32>
      %c1_9 = arith.constant 1 : index
      %c0_10 = arith.constant 0 : index
      %34 = arith.index_cast %9 : i32 to index
      %35 = vector.load %arg6[%c1_9, %c0_10, %34] : memref<2x16x384xf32, #tpu.memory_space<vmem>>, vector<1x16x128xf32>
      %36 = vector.shape_cast %35 : vector<1x16x128xf32> to vector<16x128xf32>
      %37 = vector.shape_cast %33 : vector<16x128xf32> to vector<1x16x128xf32>
      tpu.vector_store %arg6[%c1_9, %c0_10, %34], %37 {strides = array<i32>} : memref<2x16x384xf32, #tpu.memory_space<vmem>>, vector<1x16x128xf32>,
      %cst_11 = arith.constant dense<0.000000e+00> : vector<16xf32>
      %38 = vector.multi_reduction <add>, %27, %cst_11 [1] : vector<16x256xf32> to vector<16xf32>
      %39 = vector.shape_cast %38 : vector<16xf32> to vector<16x1xf32>
      %40 = arith.mulf %27, %27 : vector<16x256xf32>
      %cst_12 = arith.constant dense<0.000000e+00> : vector<16xf32>
      %41 = vector.multi_reduction <add>, %40, %cst_12 [1] : vector<16x256xf32> to vector<16xf32>
      %42 = vector.shape_cast %41 : vector<16xf32> to vector<16x1xf32>
      %c0_i32_13 = arith.constant 0 : i32
      %43 = arith.cmpi eq, %arg1, %c0_i32_13 : i32
      %44 = arith.extui %43 : i1 to i32
      %c0_i32_14 = arith.constant 0 : i32
      %45 = arith.cmpi ne, %44, %c0_i32_14 : i32
      scf.if %45 {
        %cst_24 = arith.constant 0.000000e+00 : f32
        %55 = vector.broadcast %cst_24 : f32 to vector<16x1xf32>
        %c0_25 = arith.constant 0 : index
        %c0_26 = arith.constant 0 : index
        %56 = vector.load %arg7[%c0_25, %c0_26] : memref<16x1xf32, #tpu.memory_space<vmem>>, vector<16x1xf32>
        tpu.vector_store %arg7[%c0_25, %c0_26], %55 {strides = array<i32>} : memref<16x1xf32, #tpu.memory_space<vmem>>, vector<16x1xf32>,
        %cst_27 = arith.constant 0.000000e+00 : f32
        %57 = vector.broadcast %cst_27 : f32 to vector<16x1xf32>
        %c0_28 = arith.constant 0 : index
        %c0_29 = arith.constant 0 : index
        %58 = vector.load %arg8[%c0_28, %c0_29] : memref<16x1xf32, #tpu.memory_space<vmem>>, vector<16x1xf32>
        tpu.vector_store %arg8[%c0_28, %c0_29], %57 {strides = array<i32>} : memref<16x1xf32, #tpu.memory_space<vmem>>, vector<16x1xf32>,
      } else {
      }
      %c0_15 = arith.constant 0 : index
      %c0_16 = arith.constant 0 : index
      %46 = vector.load %arg7[%c0_15, %c0_16] : memref<16x1xf32, #tpu.memory_space<vmem>>, vector<16x1xf32>
      %47 = arith.addf %46, %39 : vector<16x1xf32>
      %c0_17 = arith.constant 0 : index
      %c0_18 = arith.constant 0 : index
      %48 = vector.load %arg7[%c0_17, %c0_18] : memref<16x1xf32, #tpu.memory_space<vmem>>, vector<16x1xf32>
      tpu.vector_store %arg7[%c0_17, %c0_18], %47 {strides = array<i32>} : memref<16x1xf32, #tpu.memory_space<vmem>>, vector<16x1xf32>,
      %c0_19 = arith.constant 0 : index
      %c0_20 = arith.constant 0 : index
      %49 = vector.load %arg8[%c0_19, %c0_20] : memref<16x1xf32, #tpu.memory_space<vmem>>, vector<16x1xf32>
      %50 = arith.addf %49, %42 : vector<16x1xf32>
      %c0_21 = arith.constant 0 : index
      %c0_22 = arith.constant 0 : index
      %51 = vector.load %arg8[%c0_21, %c0_22] : memref<16x1xf32, #tpu.memory_space<vmem>>, vector<16x1xf32>
      tpu.vector_store %arg8[%c0_21, %c0_22], %50 {strides = array<i32>} : memref<16x1xf32, #tpu.memory_space<vmem>>, vector<16x1xf32>,
      %c2_i32 = arith.constant 2 : i32
      %52 = arith.cmpi eq, %arg1, %c2_i32 : i32
      %53 = arith.extui %52 : i1 to i32
      %c0_i32_23 = arith.constant 0 : i32
      %54 = arith.cmpi ne, %53, %c0_i32_23 : i32
      scf.if %54 {
        %c0_24 = arith.constant 0 : index
        %c0_25 = arith.constant 0 : index
        %55 = vector.load %arg7[%c0_24, %c0_25] : memref<16x1xf32, #tpu.memory_space<vmem>>, vector<16x1xf32>
        %cst_26 = arith.constant 0.00130208337 : f32
        %56 = vector.broadcast %cst_26 : f32 to vector<16x1xf32>
        %57 = arith.mulf %55, %56 : vector<16x1xf32>
        %c0_27 = arith.constant 0 : index
        %c0_28 = arith.constant 0 : index
        %58 = vector.load %arg8[%c0_27, %c0_28] : memref<16x1xf32, #tpu.memory_space<vmem>>, vector<16x1xf32>
        %cst_29 = arith.constant 0.00130208337 : f32
        %59 = vector.broadcast %cst_29 : f32 to vector<16x1xf32>
        %60 = arith.mulf %58, %59 : vector<16x1xf32>
        %61 = arith.mulf %57, %57 : vector<16x1xf32>
        %62 = arith.subf %60, %61 : vector<16x1xf32>
        %cst_30 = arith.constant 0.000000e+00 : f32
        %63 = vector.broadcast %cst_30 : f32 to vector<16x1xf32>
        %64 = arith.maximumf %62, %63 : vector<16x1xf32>
        %c0_31 = arith.constant 0 : index
        %c0_32 = arith.constant 0 : index
        %65 = vector.load %arg4[%c0_31, %c0_32] : memref<16x2xf32, #tpu.memory_space<vmem>>, vector<16x1xf32>
        %c0_33 = arith.constant 0 : index
        %c1_34 = arith.constant 1 : index
        %66 = vector.load %arg4[%c0_33, %c1_34] : memref<16x2xf32, #tpu.memory_space<vmem>>, vector<16x1xf32>
        %cst_35 = arith.constant 9.99999974E-6 : f32
        %67 = vector.broadcast %cst_35 : f32 to vector<16x1xf32>
        %68 = arith.addf %64, %67 : vector<16x1xf32>
        %69 = math.rsqrt %68 : vector<16x1xf32>
        %70 = arith.mulf %65, %69 : vector<16x1xf32>
        %71 = arith.mulf %57, %70 : vector<16x1xf32>
        %72 = arith.subf %66, %71 : vector<16x1xf32>
        %73 = tpu.concatenate %70, %72 in 1 : vector<16x1xf32>, vector<16x1xf32> -> vector<16x2xf32>
        %c0_36 = arith.constant 0 : index
        %c0_37 = arith.constant 0 : index
        %74 = vector.load %arg9[%c0_36, %c0_37] : memref<16x2xf32, #tpu.memory_space<vmem>>, vector<16x2xf32>
        tpu.vector_store %arg9[%c0_36, %c0_37], %73 {strides = array<i32>} : memref<16x2xf32, #tpu.memory_space<vmem>>, vector<16x2xf32>,
      } else {
      }
    } else {
    }
    %c1_i32 = arith.constant 1 : i32
    %3 = arith.cmpi eq, %arg0, %c1_i32 : i32
    %4 = arith.extui %3 : i1 to i32
    %c0_i32_1 = arith.constant 0 : i32
    %5 = arith.cmpi ne, %4, %c0_i32_1 : i32
    scf.if %5 {
      %c128_i32 = arith.constant 128 : i32
      %6 = arith.muli %arg1, %c128_i32 : i32
      %7 = tpu.assume_multiple %6, 128 : i32
      %c0 = arith.constant 0 : index
      %c0_2 = arith.constant 0 : index
      %8 = arith.index_cast %7 : i32 to index
      %9 = vector.load %arg6[%c0, %c0_2, %8] : memref<2x16x384xf32, #tpu.memory_space<vmem>>, vector<2x16x128xf32>
      %c0_3 = arith.constant 0 : index
      %c0_4 = arith.constant 0 : index
      %10 = vector.load %arg9[%c0_3, %c0_4] : memref<16x2xf32, #tpu.memory_space<vmem>>, vector<16x1xf32>
      %11 = vector.shape_cast %10 : vector<16x1xf32> to vector<1x16x1xf32>
      %c0_5 = arith.constant 0 : index
      %c1 = arith.constant 1 : index
      %12 = vector.load %arg9[%c0_5, %c1] : memref<16x2xf32, #tpu.memory_space<vmem>>, vector<16x1xf32>
      %13 = vector.shape_cast %12 : vector<16x1xf32> to vector<1x16x1xf32>
      %14 = vector.broadcast %11 : vector<1x16x1xf32> to vector<2x16x128xf32>
      %15 = arith.mulf %9, %14 : vector<2x16x128xf32>
      %16 = vector.broadcast %13 : vector<1x16x1xf32> to vector<2x16x128xf32>
      %17 = arith.addf %15, %16 : vector<2x16x128xf32>
      %18 = vector.extract_strided_slice %17 {offsets = [0, 0, 0], sizes = [2, 8, 128], strides = [1, 1, 1]} : vector<2x16x128xf32> to vector<2x8x128xf32>
      %19 = vector.extract_strided_slice %17 {offsets = [0, 8, 0], sizes = [2, 8, 128], strides = [1, 1, 1]} : vector<2x16x128xf32> to vector<2x8x128xf32>
      %20 = arith.addf %18, %19 : vector<2x8x128xf32>
      %cst = arith.constant 0.000000e+00 : f32
      %21 = vector.broadcast %cst : f32 to vector<2x8x128xf32>
      %22 = arith.maximumf %20, %21 : vector<2x8x128xf32>
      %c0_6 = arith.constant 0 : index
      %c0_7 = arith.constant 0 : index
      %c0_8 = arith.constant 0 : index
      %23 = vector.load %arg5[%c0_6, %c0_7, %c0_8] : memref<2x8x128xf32, #tpu.memory_space<vmem>>, vector<2x8x128xf32>
      tpu.vector_store %arg5[%c0_6, %c0_7, %c0_8], %22 {strides = array<i32>} : memref<2x8x128xf32, #tpu.memory_space<vmem>>, vector<2x8x128xf32>,
    } else {
    }
    return
  }
  func.func @transform_0(%arg0: i32, %arg1: i32) -> (i32, i32, i32) {
    %c0_i32 = arith.constant 0 : i32
    %c0_i32_0 = arith.constant 0 : i32
    %c0_i32_1 = arith.constant 0 : i32
    %c0_i32_2 = arith.constant 0 : i32
    return %c0_i32, %c0_i32_0, %c0_i32_1 : i32, i32, i32
  }
  func.func @transform_1(%arg0: i32, %arg1: i32) -> (i32, i32) {
    %c0_i32 = arith.constant 0 : i32
    %c0_i32_0 = arith.constant 0 : i32
    %c0_i32_1 = arith.constant 0 : i32
    return %c0_i32, %c0_i32_0 : i32, i32
  }
  func.func @transform_2(%arg0: i32, %arg1: i32) -> (i32, i32) {
    %c0_i32 = arith.constant 0 : i32
    %c0_i32_0 = arith.constant 0 : i32
    %c0_i32_1 = arith.constant 0 : i32
    return %c0_i32, %c0_i32_0 : i32, i32
  }
  func.func @transform_3(%arg0: i32, %arg1: i32) -> (i32, i32, i32) {
    %0 = arith.muli %arg0, %arg1 : i32
    %c0_i32 = arith.constant 0 : i32
    %c0_i32_0 = arith.constant 0 : i32
    %c0_i32_1 = arith.constant 0 : i32
    return %c0_i32, %c0_i32_0, %0 : i32, i32, i32
  }
}

</mosaic_0001>

<llo_original>
// kernel: tpu_custom_call.1
$region0: #{tpu_custom_call.1}
  #allocation0 [shape = 'u32[]', space=smem, size = 0x4, offset = 0x4, fixed_abs, tag = 'smem constant byte address 0x4 - core index']
  #allocation1 [shape = 'u32[144,128]{1,0:T(1,128)}', space=vmem, size = 0x12000, scoped, tag = 'internal scratch']
  #allocation2 [shape = 'f32[2,16,384]{2,1,0:T(8,128)}', space=vmem, size = 0xc000, scoped, tag = 'scratch operand']
  #allocation3 [shape = 'f32[16,1]{1,0:T(8,128)}', space=vmem, size = 0x2000, scoped, tag = 'scratch operand']
  #allocation4 [shape = 'f32[16,1]{1,0:T(8,128)}', space=vmem, size = 0x2000, scoped, tag = 'scratch operand']
  #allocation5 [shape = 'f32[16,2]{1,0:T(8,128)}', space=vmem, size = 0x2000, scoped, tag = 'scratch operand']
  %s0 = inlined_call_operand.hbm [shape: f32[2,8,512], index: 0, kind: input, shape index: {}]
  %s1 = inlined_call_operand.vmem [shape: bf16[16,24], index: 1, kind: input, shape index: {}]
  %s2 = inlined_call_operand.vmem [shape: f32[16,2], index: 2, kind: input, shape index: {}]
  %s3 = inlined_call_operand.hbm [shape: f32[2,8,384], index: 3, kind: output, shape index: {}]
  %s4 = sld [smem:[#allocation0]]
  $region65: #{tpu_custom_call.1} parent=0
    _
  %s6 = ssub.s32 1, %s4
  %s7 = scalar_select 0, %s6, %s4
  $region1: #{tpu_custom_call.1} parent=0
    #allocation6 [shape = 'u8[32768]{0}', space=vmem, size = 0x8000, scoped, tag = 'input window, operand 0, single buffered']
    #allocation7 [shape = 's32[2]{0}', space=sflag, size = 0x8, scoped, tag = 'scoped memory for tpu_custom_call.1']
    #allocation8 [shape = 's32[2]{0}', space=sflag, size = 0x8, scoped, tag = 'scoped memory for tpu_custom_call.1']
    #allocation9 [shape = 'u8[16384]{0}', space=vmem, size = 0x4000, scoped, tag = 'output window, operand 0']
    %8 = vsyncpa [#allocation7], 0
    %9 = vsyncpa [#allocation8], 0
    %s10 = scalar_lea.sflag [#allocation8], 1
    %11 = vsyncpa %s10, 0
    loop: start=0, step=1, limit=8
    $region2: #{tpu_custom_call.1} parent=1 // loop_pre_header
      _
    $region3: #{tpu_custom_call.1} parent=1 // loop_header
      %s13 = sphi 0, %s17
      %p14 = scmp.ge.s32.totalorder %s13, 8
      %s20 = sphi 0, %s32
      %s21 = sphi 0, %s28
      %s22 = sphi 0, %s20
      %s23 = sphi 0, %s21
      %s24 = sphi 0, %s22
      %s25 = sphi 0, %s23
      %s33 = sphi 0, %s33
      %s35 = sphi 0, %s33
      %s36 = sphi 0, %s35
      %s50 = sphi 0, %s36
      %s54 = sphi 0, %s54
      %s56 = sphi 0, %s54
      %s57 = sphi 0, %s56
      %s71 = sphi 0, %s57
      %s75 = sphi 0, %s75
      %s77 = sphi 0, %s75
      %s78 = sphi 0, %s77
      %s92 = sphi 0, %s78
      %s100 = sphi 0, %s102
      %s103 = sphi 0, %s100
      %s104 = sphi 0, %s103
      %s120 = sphi 0, %s104
    $region4: #{tpu_custom_call.1} parent=1 // loop_header_branch
      %16 = sbr.rel (%p14) target = $region8
    $region5: #{tpu_custom_call.1} parent=1 // loop_body
      %s18 = ssub.s32 %s13, 1
      %s19 = ssub.s32 %s13, 2
      %s26 = sadd.s32 1, %s21
      %p27 = scmp.ge.s32.totalorder %s26, 3
      %s28 = scalar_select %p27, 0, %s26
      %s29 = sadd.s32 1, %s20
      %s30 = scalar_select %p27, %s29, %s20
      %p31 = scmp.ge.s32.totalorder %s30, 2
      %s32 = scalar_select %p31, 0, %s30
      %s34 = sadd.s32 %s33, 1
      %p37 = scmp.eq.s32.totalorder %s13, 5
      %p38 = scmp.ne.s32.totalorder %s33, %s35
      %p39 = scmp.eq.s32.totalorder %s13, 0
      %p40 = por %p38, %p39
      %p41 = scmp.ne.s32.totalorder %s33, %s35
      %p42 = scmp.eq.s32.totalorder %s18, 5
      %p43 = por %p41, %p42
      %p44 = scmp.ne.s32.totalorder %s35, %s36
      %p45 = scmp.eq.s32.totalorder %s18, 0
      %p46 = por %p44, %p45
      %p47 = scmp.ne.s32.totalorder %s35, %s36
      %p48 = scmp.eq.s32.totalorder %s19, 5
      %p49 = por %p47, %p48
      %p51 = scmp.ne.s32.totalorder %s36, %s50
      %p52 = scmp.eq.s32.totalorder %s19, 0
      %p53 = por %p51, %p52
      %s55 = sadd.s32 %s54, 1
      %p58 = scmp.eq.s32.totalorder %s13, 5
      %p59 = scmp.ne.s32.totalorder %s54, %s56
      %p60 = scmp.eq.s32.totalorder %s13, 0
      %p61 = por %p59, %p60
      %p62 = scmp.ne.s32.totalorder %s54, %s56
      %p63 = scmp.eq.s32.totalorder %s18, 5
      %p64 = por %p62, %p63
      %p65 = scmp.ne.s32.totalorder %s56, %s57
      %p66 = scmp.eq.s32.totalorder %s18, 0
      %p67 = por %p65, %p66
      %p68 = scmp.ne.s32.totalorder %s56, %s57
      %p69 = scmp.eq.s32.totalorder %s19, 5
      %p70 = por %p68, %p69
      %p72 = scmp.ne.s32.totalorder %s57, %s71
      %p73 = scmp.eq.s32.totalorder %s19, 0
      %p74 = por %p72, %p73
      %s76 = sadd.s32 %s75, 1
      %p79 = scmp.eq.s32.totalorder %s13, 5
      %p80 = scmp.ne.s32.totalorder %s75, %s77
      %p81 = scmp.eq.s32.totalorder %s13, 0
      %p82 = por %p80, %p81
      %p83 = scmp.ne.s32.totalorder %s75, %s77
      %p84 = scmp.eq.s32.totalorder %s18, 5
      %p85 = por %p83, %p84
      %p86 = scmp.ne.s32.totalorder %s77, %s78
      %p87 = scmp.eq.s32.totalorder %s18, 0
      %p88 = por %p86, %p87
      %p89 = scmp.ne.s32.totalorder %s77, %s78
      %p90 = scmp.eq.s32.totalorder %s19, 5
      %p91 = por %p89, %p90
      %p93 = scmp.ne.s32.totalorder %s78, %s92
      %p94 = scmp.eq.s32.totalorder %s19, 0
      %p95 = por %p93, %p94
      %s96 = smul.u32 %s20, %s21
      %s97 = smul.u32 %s32, %s28
      %s98 = ssub.s32 %s96, %s97
      %p99 = scmp.eq.s32.totalorder %s98, 0
      %s101 = sadd.s32 %s100, 1
      %s102 = scalar_select %p99, %s100, %s101
      %p105 = pneg %p99
      %p106 = scmp.eq.s32.totalorder %s13, 5
      %p107 = por %p105, %p106
      %p108 = scmp.ne.s32.totalorder %s100, %s103
      %p109 = scmp.eq.s32.totalorder %s13, 0
      %p110 = por %p108, %p109
      %p111 = scmp.ne.s32.totalorder %s100, %s103
      %p112 = scmp.eq.s32.totalorder %s18, 5
      %p113 = por %p111, %p112
      %p114 = scmp.ne.s32.totalorder %s103, %s104
      %p115 = scmp.eq.s32.totalorder %s18, 0
      %p116 = por %p114, %p115
      %p117 = scmp.ne.s32.totalorder %s103, %s104
      %p118 = scmp.eq.s32.totalorder %s19, 5
      %p119 = por %p117, %p118
      %p121 = scmp.ne.s32.totalorder %s104, %s120
      %p122 = scmp.eq.s32.totalorder %s19, 0
      %p123 = por %p121, %p122
      %p124 = scmp.le.s32.totalorder 1, %s13
      %p125 = scmp.lt.s32.totalorder %s13, 7
      %p126 = pnand %p124, %p125
      %p127 = pneg %p126
      // Predicated region
      $region9: #{tpu_custom_call.1} parent=5 // pred_check
        _
      $region10: #{tpu_custom_call.1} parent=5 // pred_check_branch
        %129 = sbr.rel (%p126) target = $region12
      $region11: #{tpu_custom_call.1} parent=5 // pred_region
        %s130 = ssub.s32 %s13, 1
        // Predicated region
        $region13: #{tpu_custom_call.1} parent=11 // pred_check
          %p131 = pneg %p46
        $region14: #{tpu_custom_call.1} parent=11 // pred_check_branch
          %133 = sbr.rel (%p131) target = $region16
        $region15: #{tpu_custom_call.1} parent=11 // pred_region
          %s135 = ssub.s32 1024, 1024
          %136 = vsyncadd [#allocation7], %s135
          %s137 = sshll.u32 [#allocation6], 4
          %s138 = int_to_ptr.vmem [resolvable:$true] %s137
          %143 = dma.hbm_to_vmem [thread:$0]  %s0, 1024, %s138, [#allocation7], 512, 512, 32
        $region16: #{tpu_custom_call.1} parent=11 // pred_fallthru
          _
        // Predicated region
        $region17: #{tpu_custom_call.1} parent=11 // pred_check
          %p144 = pneg %p67
        $region18: #{tpu_custom_call.1} parent=11 // pred_check_branch
          %146 = sbr.rel (%p144) target = $region20
        $region19: #{tpu_custom_call.1} parent=11 // pred_region
          _
        $region20: #{tpu_custom_call.1} parent=11 // pred_fallthru
          _
        // Predicated region
        $region21: #{tpu_custom_call.1} parent=11 // pred_check
          %p147 = pneg %p88
        $region22: #{tpu_custom_call.1} parent=11 // pred_check_branch
          %149 = sbr.rel (%p147) target = $region24
        $region23: #{tpu_custom_call.1} parent=11 // pred_region
          _
        $region24: #{tpu_custom_call.1} parent=11 // pred_fallthru
          _
      $region12: #{tpu_custom_call.1} parent=5 // pred_fallthru
        _
      %p150 = scmp.lt.s32.totalorder %s13, 6
      // Predicated region
      $region25: #{tpu_custom_call.1} parent=5 // pred_check
        %p151 = pneg %p150
      $region26: #{tpu_custom_call.1} parent=5 // pred_check_branch
        %153 = sbr.rel (%p151) target = $region28
      $region27: #{tpu_custom_call.1} parent=5 // pred_region
        _
      $region28: #{tpu_custom_call.1} parent=5 // pred_fallthru
        _
      %p154 = scmp.le.s32.totalorder 1, %s13
      %p155 = scmp.lt.s32.totalorder %s13, 7
      %p156 = pnand %p154, %p155
      %p157 = pneg %p156
      // Predicated region
      $region29: #{tpu_custom_call.1} parent=5 // pred_check
        _
      $region30: #{tpu_custom_call.1} parent=5 // pred_check_branch
        %159 = sbr.rel (%p156) target = $region32
      $region31: #{tpu_custom_call.1} parent=5 // pred_region
        %s160 = ssub.s32 %s13, 1
        // Predicated region
        $region33: #{tpu_custom_call.1} parent=31 // pred_check
          %p161 = pneg %p46
        $region34: #{tpu_custom_call.1} parent=31 // pred_check_branch
          %163 = sbr.rel (%p161) target = $region36
        $region35: #{tpu_custom_call.1} parent=31 // pred_region
          %164 = dma.done [#allocation7], 1024
        $region36: #{tpu_custom_call.1} parent=31 // pred_fallthru
          _
        %p165 = pneg %p46
        %p166 = pneg %p43
        %p167 = pneg %p67
        %p168 = pneg %p64
        %p169 = pneg %p88
        %p170 = pneg %p85
        %p171 = pneg %p116
        %p172 = pneg %p113
        %s173 = sand.u32 %s103, 1
        %s174 = scalar_lea.sflag [#allocation8], %s173
        %s175 = sand.u32 %s103, 1
        %s176 = smul.addr %s175, 16
        %s177 = scalar_lea.vmem [#allocation9], %s176
        %s178 = smul.u32 %s22, %s23
        %p180 = scmp.eq.s32.totalorder %s22, 0
        // Predicated region
        $region37: #{tpu_custom_call.1} parent=31 // pred_check
          %p181 = pneg %p180
        $region38: #{tpu_custom_call.1} parent=31 // pred_check_branch
          %183 = sbr.rel (%p181) target = $region40
        $region39: #{tpu_custom_call.1} parent=31 // pred_region
          %s184 = smul.u32 %s23, 128
          %v185 = vld [vmem:[%s1] sm:$0xf]
          %v186 = vld [vmem:[%s1 + $0x4] sm:$0xf]
          %s187 = sshra.s32 %s184, 7
          %s188 = sand.u32 %s184, 127
          %s189 = smul.addr %s187, 8
          %s190 = scalar_lea.vmem [#allocation6], %s189
          %v191 = vld [vmem:[%s190] sm:$0xff]
          %v192 = vld [vmem:[%s190 + $0x8] sm:$0xff]
          %195 = vrot.lane.b32.xlu0 %v191, 127
          %v196 = vpop.permute.xlu0 %195
          %197 = vrot.lane.b32.xlu0 %v192, 127
          %v198 = vpop.permute.xlu0 %197
          %vm199 = vcmask 1039360
          %v200 = vsel %vm199, %v196, %v198
          %202 = vrot.lane.b32.xlu0 %v191, 126
          %v203 = vpop.permute.xlu0 %202
          %204 = vrot.lane.b32.xlu0 %v192, 126
          %v205 = vpop.permute.xlu0 %204
          %vm206 = vcmask 1031168
          %v207 = vsel %vm206, %v203, %v205
          %s209 = sadd.s32 %s187, 4
          %s210 = smul.addr %s209, 8
          %s211 = scalar_lea.vmem [#allocation6], %s210
          %v212 = vld [vmem:[%s211] sm:$0xff]
          %v213 = vld [vmem:[%s211 + $0x8] sm:$0xff]
          %216 = vrot.lane.b32.xlu0 %v212, 127
          %v217 = vpop.permute.xlu0 %216
          %218 = vrot.lane.b32.xlu0 %v213, 127
          %v219 = vpop.permute.xlu0 %218
          %v220 = vsel %vm199, %v217, %v219
          %222 = vrot.lane.b32.xlu0 %v212, 126
          %v223 = vpop.permute.xlu0 %222
          %224 = vrot.lane.b32.xlu0 %v213, 126
          %v225 = vpop.permute.xlu0 %224
          %v226 = vsel %vm206, %v223, %v225
          %v228 = vpack.c.bf16 %v200, %v191
          %v229 = vpack.c.bf16 %v220, %v212
          %v230 = vpack.c.bf16 %v207, %v207
          %v231 = vpack.c.bf16 %v226, %v226
          %v234 = vunpack.c.l.b16 %v185
          %v235 = vunpack.c.l.b16 %v186
          %v236 = vpack.c.b16 %v235, %v234
          %vm237 = vcmask 195584
          %v239 = vsel %vm237, %v236, 0
          %vm241 = vcmask 1043456
          %v243 = vsel %vm241, %v230, 0
          %v246 = vsel %vm241, %v231, 0
          %248 = vmatprep.subr.bf16.mxu0 0
          %249 = vmatpush1.bf16.msra.mxu0 0
          %250 = vmatprep.subr.bf16.mxu0 0
          %251 = vmatpush1.bf16.msra.mxu0 0
          %252 = vmatprep.subr.bf16.mxu0 0
          %253 = vmatpush1.bf16.msra.mxu0 0
          %254 = vmatprep.subr.bf16.mxu0 0
          %255 = vmatpush1.bf16.msra.mxu0 0
          %256 = vmatprep.subr.bf16.mxu0 0
          %257 = vmatpush1.bf16.msra.mxu0 0
          %258 = vmatprep.subr.bf16.mxu0 0
          %259 = vmatpush1.bf16.msra.mxu0 0
          %260 = vmatprep.subr.bf16.mxu0 %v246
          %261 = vmatpush1.bf16.msra.mxu0 %v243
          %262 = vmatprep.subr.bf16.mxu0 %v229
          %263 = vmatpush1.bf16.msra.mxu0 %v228
          %264 = vmatprep.subr.bf16.mxu0 0
          %265 = vmatpush2.bf16.msra.mxu0 0
          %266 = vmatprep.subr.bf16.mxu0 0
          %267 = vmatpush2.bf16.msra.mxu0 0
          %268 = vmatprep.subr.bf16.mxu0 0
          %269 = vmatpush2.bf16.msra.mxu0 0
          %270 = vmatprep.subr.bf16.mxu0 0
          %271 = vmatpush2.bf16.msra.mxu0 0
          %272 = vmatprep.subr.bf16.mxu0 0
          %273 = vmatpush2.bf16.msra.mxu0 0
          %274 = vmatprep.subr.bf16.mxu0 0
          %275 = vmatpush2.bf16.msra.mxu0 0
          %276 = vmatprep.subr.bf16.mxu0 0
          %277 = vmatpush2.bf16.msra.mxu0 0
          %278 = vmatprep.subr.bf16.mxu0 0
          %279 = vmatpush2.bf16.msra.mxu0 0
          %280 = vmatprep.mubr.bf16.mxu0 0
          %281 = vmatmul.mubr.bf16.gmra.mxu0 %v239
          %v282 = vpop.f32.mrf.mxu0
          %v283 = vadd.f32 0.0, %v282
          %v284 = vpop.f32.mrf.mxu0
          %v285 = vadd.f32 0.0, %v284
          %v286 = vpop.f32.mrf.mxu0
          %v287 = vadd.f32 0.0, %v286
          %v288 = vpop.f32.mrf.mxu0
          %v289 = vadd.f32 0.0, %v288
          %290 = vdwg.mxu0
          %s291 = smul.addr %s187, 8
          %s292 = scalar_lea.vmem [#allocation2], %s291
          %293 = vst [vmem:[%s292] sm:$0xff] %v283
          %294 = vst [vmem:[%s292 + $0x18] sm:$0xff] %v287
          %s295 = sadd.s32 %s187, 6
          %s296 = smul.addr %s295, 8
          %s297 = scalar_lea.vmem [#allocation2], %s296
          %298 = vst [vmem:[%s297] sm:$0xff] %v285
          %299 = vst [vmem:[%s297 + $0x18] sm:$0xff] %v289
          %v300 = vadd.f32 %v283, %v285
          %301 = vadd.xlane.f32.xlu0 %v300
          %v302 = vpop.xlane.xlu0 %301
          %v303 = vadd.f32 %v287, %v289
          %304 = vadd.xlane.f32.xlu0 %v303
          %v305 = vpop.xlane.xlu0 %304
          %v306 = vmul.f32 %v283, %v283
          %v307 = vmul.f32 %v285, %v285
          %v308 = vmul.f32 %v287, %v287
          %v309 = vmul.f32 %v289, %v289
          %v310 = vadd.f32 %v306, %v307
          %311 = vadd.xlane.f32.xlu0 %v310
          %v312 = vpop.xlane.xlu0 %311
          %v313 = vadd.f32 %v308, %v309
          %314 = vadd.xlane.f32.xlu0 %v313
          %v315 = vpop.xlane.xlu0 %314
          %p316 = scmp.eq.s32.totalorder %s23, 0
          // Predicated region
          $region41: #{tpu_custom_call.1} parent=39 // pred_check
            %p317 = pneg %p316
          $region42: #{tpu_custom_call.1} parent=39 // pred_check_branch
            %319 = sbr.rel (%p317) target = $region44
          $region43: #{tpu_custom_call.1} parent=39 // pred_region
            %vm320 = vcmask 7168
            %321 = vst.msk [vmem:[#allocation3] sm:$0xff] %vm320, 0.0
            %322 = vst.msk [vmem:[#allocation3 + $0x8] sm:$0xff] %vm320, 0.0
            %323 = vst.msk [vmem:[#allocation4] sm:$0xff] %vm320, 0.0
            %324 = vst.msk [vmem:[#allocation4 + $0x8] sm:$0xff] %vm320, 0.0
          $region44: #{tpu_custom_call.1} parent=39 // pred_fallthru
            _
          %v325 = vld [vmem:[#allocation3] sm:$0xff]
          %v326 = vld [vmem:[#allocation3 + $0x8] sm:$0xff]
          %v327 = vadd.f32 %v325, %v302
          %v328 = vadd.f32 %v326, %v305
          %vm329 = vcmask 7168
          %330 = vst.msk [vmem:[#allocation3] sm:$0xff] %vm329, %v327
          %331 = vst.msk [vmem:[#allocation3 + $0x8] sm:$0xff] %vm329, %v328
          %v332 = vld [vmem:[#allocation4] sm:$0xff]
          %v333 = vld [vmem:[#allocation4 + $0x8] sm:$0xff]
          %v334 = vadd.f32 %v332, %v312
          %v335 = vadd.f32 %v333, %v315
          %336 = vst.msk [vmem:[#allocation4] sm:$0xff] %vm329, %v334
          %337 = vst.msk [vmem:[#allocation4 + $0x8] sm:$0xff] %vm329, %v335
          %p338 = scmp.eq.s32.totalorder %s23, 2
          // Predicated region
          $region45: #{tpu_custom_call.1} parent=39 // pred_check
            %p339 = pneg %p338
          $region46: #{tpu_custom_call.1} parent=39 // pred_check_branch
            %341 = sbr.rel (%p339) target = $region48
          $region47: #{tpu_custom_call.1} parent=39 // pred_region
            %v342 = vld [vmem:[#allocation3] sm:$0xff]
            %v343 = vld [vmem:[#allocation3 + $0x8] sm:$0xff]
            %v344 = vmul.f32 %v342, 0.0013020834
            %v345 = vmul.f32 %v343, 0.0013020834
            %v346 = vld [vmem:[#allocation4] sm:$0xff]
            %v347 = vld [vmem:[#allocation4 + $0x8] sm:$0xff]
            %v348 = vmul.f32 %v346, 0.0013020834
            %v349 = vmul.f32 %v347, 0.0013020834
            %v350 = vmul.f32 %v344, %v344
            %v351 = vmul.f32 %v345, %v345
            %v352 = vsub.f32 %v348, %v350
            %v353 = vsub.f32 %v349, %v351
            %v354 = vmax.f32 %v352, 0.0
            %v355 = vmax.f32 %v353, 0.0
            %v356 = vld [vmem:[%s2] sm:$0xff]
            %v357 = vld [vmem:[%s2 + $0x8] sm:$0xff]
            %v358 = vadd.f32 %v354, 1e-05
            %v359 = vadd.f32 %v355, 1e-05
            %v360 = vrsqrt.pop %v358
            %v361 = vrsqrt.pop %v359
            %v362 = vmul.f32 %v356, %v360
            %v363 = vmul.f32 %v357, %v361
            %v364 = vmul.f32 %v344, %v362
            %v365 = vmul.f32 %v345, %v363
            %368 = vrot.lane.b32.xlu0 %v364, 1
            %v369 = vpop.permute.xlu0 %368
            %370 = vrot.lane.b32.xlu0 %v365, 1
            %v371 = vpop.permute.xlu0 %370
            %v374 = vsub.f32 %v356, %v369
            %v375 = vsub.f32 %v357, %v371
            %v376 = vsel %vm329, %v362, %v374
            %v377 = vsel %vm329, %v363, %v375
            %vm378 = vcmask 15360
            %379 = vst.msk [vmem:[#allocation5] sm:$0xff] %vm378, %v376
            %380 = vst.msk [vmem:[#allocation5 + $0x8] sm:$0xff] %vm378, %v377
          $region48: #{tpu_custom_call.1} parent=39 // pred_fallthru
            _
        $region40: #{tpu_custom_call.1} parent=31 // pred_fallthru
          _
        %p381 = scmp.eq.s32.totalorder %s22, 1
        // Predicated region
        $region49: #{tpu_custom_call.1} parent=31 // pred_check
          %p382 = pneg %p381
        $region50: #{tpu_custom_call.1} parent=31 // pred_check_branch
          %384 = sbr.rel (%p382) target = $region52
        $region51: #{tpu_custom_call.1} parent=31 // pred_region
          %s385 = smul.u32 %s23, 128
          %s386 = sshra.s32 %s385, 7
          %s387 = sand.u32 %s385, 127
          %s388 = smul.addr %s386, 8
          %s389 = scalar_lea.vmem [#allocation2], %s388
          %v390 = vld [vmem:[%s389] sm:$0xff]
          %v391 = vld [vmem:[%s389 + $0x18] sm:$0xff]
          %v392 = vld [vmem:[%s389 + $0x30] sm:$0xff]
          %v393 = vld [vmem:[%s389 + $0x48] sm:$0xff]
          %v394 = vld [vmem:[#allocation5] sm:$0xff]
          %v395 = vld [vmem:[#allocation5 + $0x8] sm:$0xff]
          %397 = vset.pattern.permute.xlu0 0
          %398 = vperm.xlu0 %397, %v394
          %v399 = vpop.permute.xlu0 %398
          %402 = vset.pattern.permute.xlu0 0
          %403 = vperm.xlu0 %402, %v395
          %v404 = vpop.permute.xlu0 %403
          %v406 = vmul.f32 %v390, %v399
          %v407 = vmul.f32 %v391, %v404
          %v408 = vmul.f32 %v392, %v399
          %v409 = vmul.f32 %v393, %v404
          %410 = vset.pattern.permute.xlu0 1
          %411 = vperm.xlu0 %410, %v394
          %v412 = vpop.permute.xlu0 %411
          %414 = vset.pattern.permute.xlu0 1
          %415 = vperm.xlu0 %414, %v395
          %v416 = vpop.permute.xlu0 %415
          %v418 = vadd.f32 %v406, %v412
          %v419 = vadd.f32 %v407, %v416
          %v420 = vadd.f32 %v408, %v412
          %v421 = vadd.f32 %v409, %v416
          %v422 = vadd.f32 %v418, %v419
          %v423 = vadd.f32 %v420, %v421
          %v424 = vmax.f32 %v422, 0.0
          %v425 = vmax.f32 %v423, 0.0
          %426 = vst [vmem:[%s177] sm:$0xff] %v424
          %427 = vst [vmem:[%s177 + $0x8] sm:$0xff] %v425
        $region52: #{tpu_custom_call.1} parent=31 // pred_fallthru
          _
        %s428 = sand.u32 %s103, 1
        %s429 = scalar_lea.sflag [#allocation8], %s428
        %s430 = sand.u32 %s103, 1
        %s431 = smul.addr %s430, 16
        %s432 = scalar_lea.vmem [#allocation9], %s431
        // Predicated region
        $region53: #{tpu_custom_call.1} parent=31 // pred_check
          %p433 = pneg %p113
        $region54: #{tpu_custom_call.1} parent=31 // pred_check_branch
          %435 = sbr.rel (%p433) target = $region56
        $region55: #{tpu_custom_call.1} parent=31 // pred_region
          %s436 = smul.u32 %s22, %s23
          %s438 = ssub.s32 256, 256
          %439 = vsyncadd %s429, %s438
          %s440 = smul.addr %s436, 128
          %s441 = scalar_lea.hbm %s3, %s440
          %s442 = sshll.u32 %s432, 4
          %s443 = int_to_ptr.vmem [resolvable:$true] %s442
          %448 = dma.vmem_to_hbm [thread:$0]  %s443, 256, %s441, %s429, 128, 384, 8
        $region56: #{tpu_custom_call.1} parent=31 // pred_fallthru
          _
      $region32: #{tpu_custom_call.1} parent=5 // pred_fallthru
        _
      %p449 = scmp.le.s32.totalorder 2, %s13
      // Predicated region
      $region57: #{tpu_custom_call.1} parent=5 // pred_check
        %p450 = pneg %p449
      $region58: #{tpu_custom_call.1} parent=5 // pred_check_branch
        %452 = sbr.rel (%p450) target = $region60
      $region59: #{tpu_custom_call.1} parent=5 // pred_region
        %s453 = ssub.s32 %s13, 2
        // Predicated region
        $region61: #{tpu_custom_call.1} parent=59 // pred_check
          %p454 = pneg %p119
        $region62: #{tpu_custom_call.1} parent=59 // pred_check_branch
          %456 = sbr.rel (%p454) target = $region64
        $region63: #{tpu_custom_call.1} parent=59 // pred_region
          %s457 = sand.u32 %s104, 1
          %s458 = scalar_lea.sflag [#allocation8], %s457
          %s459 = sand.u32 %s104, 1
          %s460 = smul.addr %s459, 16
          %s461 = scalar_lea.vmem [#allocation9], %s460
          %462 = dma.done %s458, 256
        $region64: #{tpu_custom_call.1} parent=59 // pred_fallthru
          _
      $region60: #{tpu_custom_call.1} parent=5 // pred_fallthru
        _
    $region6: #{tpu_custom_call.1} parent=1 // loop_footer
      %s17 = sadd.s32 1, %s13
    $region7: #{tpu_custom_call.1} parent=1 // loop_footer_branch
      %12 = sbr.rel target = $region3
    $region8: #{tpu_custom_call.1} parent=1 // loop_exit
      _
    %463 = vsyncpa [#allocation7], 1
    %s464 = scalar_lea.sflag [#allocation7], 1
    %465 = vsyncpa %s464, 1
    %466 = vsyncpa [#allocation8], 1
    %s467 = scalar_lea.sflag [#allocation8], 1
    %468 = vsyncpa %s467, 1

</llo_original>
